<compile_context>
chip_gen: v5e
topology: v5e:2x2
jax: 0.10.0
libtpu: 0.0.40
codegen_flags: <defaults>
</compile_context>

<pallas_src>
import functools
import math

import jax
import jax.numpy as jnp
from jax.experimental import pallas as pl
from jax.experimental.pallas import tpu as pltpu


# ---------------------------------------------------------------------------
# Generic tiled  o = a @ b + c  kernel (c is either (M, N) or a (1, N) bias).
# ---------------------------------------------------------------------------
def _matmul_add_kernel(a_ref, b_ref, c_ref, o_ref, acc_ref):
    """a_ref:(tm,tk)  b_ref:(tk,tn)  c_ref:(tm|1,tn)  o_ref:(tm,tn)
    acc_ref:(tm,tn) f32 scratch, resident across the K (reduction) axis."""

    @pl.when(pl.program_id(2) == 0)
    def _init():
        acc_ref[...] = jnp.zeros_like(acc_ref)

    acc_ref[...] += jnp.dot(a_ref[...], b_ref[...],
                            preferred_element_type=jnp.float32)

    @pl.when(pl.program_id(2) == pl.num_programs(2) - 1)
    def _finalize():
        out = acc_ref[...] + c_ref[...].astype(jnp.float32)
        o_ref[...] = out.astype(o_ref.dtype)


def _choose_tile(dim, preferred, multiple):
    """Largest tile <= preferred that divides `dim` and is a multiple of
    `multiple`; falls back to full extent (always legal for BlockSpec)."""
    if dim <= preferred or dim % multiple != 0:
        return dim
    t = preferred
    while dim % t != 0:
        t -= multiple
    return t


def _tiled_matmul_add(a, b, c, *, out_dtype=None,
                      tm_pref=256, tn_pref=256, tk_pref=512):
    """o = a @ b + c with f32 accumulation.  c has shape (M, N) or (1, N)."""
    M, K = a.shape
    K2, N = b.shape
    assert K == K2
    out_dtype = out_dtype if out_dtype is not None else a.dtype

    tm = _choose_tile(M, tm_pref, 8)
    tn = _choose_tile(N, tn_pref, 128)
    tk = _choose_tile(K, tk_pref, 128)
    grid = (M // tm, N // tn, K // tk)

    c_rows = c.shape[0]
    c_block_rows = 1 if c_rows == 1 else tm
    c_index_map = (lambda i, j, k: (0, j)) if c_rows == 1 else (lambda i, j, k: (i, j))

    itemsize = jnp.dtype(a.dtype).itemsize
    cost = pl.CostEstimate(
        flops=2 * M * N * K,
        transcendentals=0,
        bytes_accessed=(M * K + K * N + c.size) * itemsize
        + M * N * jnp.dtype(out_dtype).itemsize,
    )

    return pl.pallas_call(
        _matmul_add_kernel,
        out_shape=jax.ShapeDtypeStruct((M, N), out_dtype),
        grid_spec=pltpu.PrefetchScalarGridSpec(
            num_scalar_prefetch=0,
            grid=grid,
            in_specs=[
                pl.BlockSpec((tm, tk), lambda i, j, k: (i, k)),
                pl.BlockSpec((tk, tn), lambda i, j, k: (k, j)),
                pl.BlockSpec((c_block_rows, tn), c_index_map),
            ],
            out_specs=pl.BlockSpec((tm, tn), lambda i, j, k: (i, j)),
            scratch_shapes=[pltpu.VMEM((tm, tn), jnp.float32)],
        ),
        compiler_params=pltpu.CompilerParams(
            dimension_semantics=("parallel", "parallel", "arbitrary")),
        cost_estimate=cost,
    )(a, b, c)


# ---------------------------------------------------------------------------
# FourierFT adapter linear forward
# ---------------------------------------------------------------------------
def fourier_linear(x, weight, bias, cas, spectrum, rows, cols, scale):
    """y = x @ (W^T + scale * idht2(scatter(spectrum))) + b.

    x: (B, S, D) ; weight: (D, D) = (out, in) with out == in ;
    bias: (D,) ; cas[n,k] = cos(2*pi*n*k/D) + sin(2*pi*n*k/D) ;
    spectrum: (k,) values, rows/cols: (k,) int scatter indices.
    """
    B, S, D = x.shape
    out_f, in_f = weight.shape
    assert out_f == in_f == D, "FourierFT requires a square base Linear"

    # Low-rank factorisation of the scattered spectrum (indices come from a
    # randperm so they are unique and scatter == sum):
    #   delta_w = cas @ dense_s @ cas * scale / D^2
    #           = (cas[:, rows] * (spectrum * scale / D^2)) @ cas[cols, :]
    u = cas[:, rows] * (spectrum * (scale / float(D * D)))[None, :]   # (D, k)
    v = cas[cols, :]                                                  # (k, D)

    # Pad the frequency (contraction) axis to a sublane-friendly size.
    kf = u.shape[1]
    kf_pad = (-kf) % 8
    if kf_pad:
        u = jnp.pad(u, ((0, 0), (0, kf_pad)))
        v = jnp.pad(v, ((0, kf_pad), (0, 0)))

    # Effective weight (transpose done once, outside the kernels):
    #   W_eff = W^T + U @ V
    w_eff = _tiled_matmul_add(u, v, weight.T, out_dtype=x.dtype)

    # Hot path: single tiled matmul over all tokens with fused bias epilogue.
    M = B * S
    m_pad = (-M) % 8
    x2 = x.reshape(M, D)
    if m_pad:
        x2 = jnp.pad(x2, ((0, m_pad), (0, 0)))
    out = _tiled_matmul_add(x2, w_eff, bias.reshape(1, D), out_dtype=x.dtype)
    if m_pad:
        out = out[:M]
    return out.reshape(B, S, D)


def make_cas_matrix(n, dtype=jnp.float32):
    k = jnp.arange(n, dtype=jnp.float32)
    ang = 2.0 * math.pi * jnp.outer(k, k) / n
    return (jnp.cos(ang) + jnp.sin(ang)).astype(dtype)


def reference_forward(x, weight, bias, cas, spectrum, rows, cols, scale):
    """Pure-JAX reference matching the PyTorch module."""
    D = weight.shape[0]
    dense_s = jnp.zeros((D, D), dtype=spectrum.dtype).at[rows, cols].set(spectrum)
    delta_w = (cas @ dense_s @ cas) / float(D * D) * scale
    base = jnp.einsum("bsk,ok->bso", x, weight) + bias
    return base + jnp.einsum("ijk,kl->ijl", x, delta_w)


if __name__ == "__main__":
    # Small shapes consistent with the module's forward:
    # x: (batch, seq, hidden); base nn.Linear(hidden -> hidden).
    B, S, D = 2, 8, 32
    n_frequency = 64
    scale = 0.1

    key = jax.random.PRNGKey(0)
    kx, kw, kb, kp, ks = jax.random.split(key, 5)

    x = jax.random.normal(kx, (B, S, D), dtype=jnp.float32)
    weight = jax.random.normal(kw, (D, D), dtype=jnp.float32) * 0.05   # (out, in)
    bias = jax.random.normal(kb, (D,), dtype=jnp.float32) * 0.01

    # Adapter params: random permutation of D*D entries, take n_frequency.
    perm = jax.random.permutation(kp, D * D)[:n_frequency]
    rows = perm // D
    cols = perm % D
    spectrum = jax.random.normal(ks, (n_frequency,), dtype=jnp.float32)

    cas = make_cas_matrix(D)

    out = fourier_linear(x, weight, bias, cas, spectrum, rows, cols, scale)
    out = jax.block_until_ready(out)

    ref = reference_forward(x, weight, bias, cas, spectrum, rows, cols, scale)
    assert out.shape == (B, S, D)
    assert jnp.allclose(out, ref, atol=1e-4, rtol=1e-4), "mismatch vs reference"

    print("KERNEL_OK")
</pallas_src>

<mosaic_0001>
module attributes {stable_mosaic.version = 11 : i64} {
  func.func @_matmul_add_kernel(%arg0: i32, %arg1: i32, %arg2: i32, %arg3: memref<32x64xf32, #tpu.memory_space<vmem>>, %arg4: memref<64x32xf32, #tpu.memory_space<vmem>>, %arg5: memref<32x32xf32, #tpu.memory_space<vmem>>, %arg6: memref<32x32xf32, #tpu.memory_space<vmem>>, %arg7: memref<32x32xf32, #tpu.memory_space<vmem>>) attributes {dimension_semantics = [#tpu.dimension_semantics<parallel>, #tpu.dimension_semantics<parallel>, #tpu.dimension_semantics<arbitrary>], iteration_bounds = array<i64: 1, 1, 1>, scalar_prefetch = 0 : i64, scratch_operands = 1 : i64, tpu.core_type = #tpu.core_type<tc>, window_params = [{transform_indices = @transform_0, window_bounds = array<i64: 32, 64>}, {transform_indices = @transform_1, window_bounds = array<i64: 64, 32>}, {transform_indices = @transform_2, window_bounds = array<i64: 32, 32>}, {transform_indices = @transform_3, window_bounds = array<i64: 32, 32>}]} {
    %c0_i32 = arith.constant 0 : i32
    %0 = arith.cmpi eq, %arg2, %c0_i32 : i32
    %1 = arith.extui %0 : i1 to i32
    %c0_i32_0 = arith.constant 0 : i32
    %2 = arith.cmpi ne, %1, %c0_i32_0 : i32
    scf.if %2 {
      %cst_10 = arith.constant 0.000000e+00 : f32
      %12 = vector.broadcast %cst_10 : f32 to vector<32x32xf32>
      %c0_11 = arith.constant 0 : index
      %c0_12 = arith.constant 0 : index
      %13 = vector.load %arg7[%c0_11, %c0_12] : memref<32x32xf32, #tpu.memory_space<vmem>>, vector<32x32xf32>
      tpu.vector_store %arg7[%c0_11, %c0_12], %12 {strides = array<i32>} : memref<32x32xf32, #tpu.memory_space<vmem>>, vector<32x32xf32>,
    } else {
    }
    %c0 = arith.constant 0 : index
    %c0_1 = arith.constant 0 : index
    %3 = vector.load %arg7[%c0, %c0_1] : memref<32x32xf32, #tpu.memory_space<vmem>>, vector<32x32xf32>
    %c0_2 = arith.constant 0 : index
    %c0_3 = arith.constant 0 : index
    %4 = vector.load %arg3[%c0_2, %c0_3] : memref<32x64xf32, #tpu.memory_space<vmem>>, vector<32x64xf32>
    %c0_4 = arith.constant 0 : index
    %c0_5 = arith.constant 0 : index
    %5 = vector.load %arg4[%c0_4, %c0_5] : memref<64x32xf32, #tpu.memory_space<vmem>>, vector<64x32xf32>
    %cst = arith.constant dense<0.000000e+00> : vector<32x32xf32>
    %6 = tpu.matmul %4, %5, %cst {dimension_numbers = #tpu.dot_dimension_numbers<[1], [0], [0], [1], [0, 0, 1, 1], [], []>} : vector<32x64xf32>, vector<64x32xf32>, vector<32x32xf32> -> vector<32x32xf32>
    %7 = arith.addf %3, %6 : vector<32x32xf32>
    %c0_6 = arith.constant 0 : index
    %c0_7 = arith.constant 0 : index
    %8 = vector.load %arg7[%c0_6, %c0_7] : memref<32x32xf32, #tpu.memory_space<vmem>>, vector<32x32xf32>
    tpu.vector_store %arg7[%c0_6, %c0_7], %7 {strides = array<i32>} : memref<32x32xf32, #tpu.memory_space<vmem>>, vector<32x32xf32>,
    %c0_i32_8 = arith.constant 0 : i32
    %9 = arith.cmpi eq, %arg2, %c0_i32_8 : i32
    %10 = arith.extui %9 : i1 to i32
    %c0_i32_9 = arith.constant 0 : i32
    %11 = arith.cmpi ne, %10, %c0_i32_9 : i32
    scf.if %11 {
      %c0_10 = arith.constant 0 : index
      %c0_11 = arith.constant 0 : index
      %12 = vector.load %arg7[%c0_10, %c0_11] : memref<32x32xf32, #tpu.memory_space<vmem>>, vector<32x32xf32>
      %c0_12 = arith.constant 0 : index
      %c0_13 = arith.constant 0 : index
      %13 = vector.load %arg5[%c0_12, %c0_13] : memref<32x32xf32, #tpu.memory_space<vmem>>, vector<32x32xf32>
      %14 = arith.addf %12, %13 : vector<32x32xf32>
      %c0_14 = arith.constant 0 : index
      %c0_15 = arith.constant 0 : index
      %15 = vector.load %arg6[%c0_14, %c0_15] : memref<32x32xf32, #tpu.memory_space<vmem>>, vector<32x32xf32>
      tpu.vector_store %arg6[%c0_14, %c0_15], %14 {strides = array<i32>} : memref<32x32xf32, #tpu.memory_space<vmem>>, vector<32x32xf32>,
    } else {
    }
    return
  }
  func.func @transform_0(%arg0: i32, %arg1: i32, %arg2: i32) -> (i32, i32) {
    %c0_i32 = arith.constant 0 : i32
    return %arg0, %arg2 : i32, i32
  }
  func.func @transform_1(%arg0: i32, %arg1: i32, %arg2: i32) -> (i32, i32) {
    %c0_i32 = arith.constant 0 : i32
    return %arg2, %arg1 : i32, i32
  }
  func.func @transform_2(%arg0: i32, %arg1: i32, %arg2: i32) -> (i32, i32) {
    %c0_i32 = arith.constant 0 : i32
    return %arg0, %arg1 : i32, i32
  }
  func.func @transform_3(%arg0: i32, %arg1: i32, %arg2: i32) -> (i32, i32) {
    %c0_i32 = arith.constant 0 : i32
    return %arg0, %arg1 : i32, i32
  }
}

</mosaic_0001>

<llo_original>
// kernel: tpu_custom_call.1
$region0: #{tpu_custom_call.1}
  #allocation0 [shape = 'u32[]', space=smem, size = 0x4, offset = 0x4, fixed_abs, tag = 'smem constant byte address 0x4 - core index']
  #allocation1 [shape = 'u32[72,128]{1,0:T(1,128)}', space=vmem, size = 0x9000, scoped, tag = 'internal scratch']
  #allocation2 [shape = 'f32[32,32]{1,0:T(8,128)}', space=vmem, size = 0x4000, scoped, tag = 'scratch operand']
  %s0 = inlined_call_operand.vmem [shape: f32[32,64], index: 0, kind: input, shape index: {}]
  %s1 = inlined_call_operand.vmem [shape: f32[64,32], index: 1, kind: input, shape index: {}]
  %s2 = inlined_call_operand.vmem [shape: f32[32,32], index: 2, kind: input, shape index: {}]
  %s3 = inlined_call_operand.hbm [shape: f32[32,32], index: 3, kind: output, shape index: {}]
  %s4 = sld [smem:[#allocation0]]
  $region30: #{tpu_custom_call.1} parent=0
    _
  %s6 = ssub.s32 1, %s4
  %s7 = scalar_select 0, %s6, %s4
  $region1: #{tpu_custom_call.1} parent=0
    #allocation3 [shape = 'u8[16384]{0}', space=vmem, size = 0x4000, scoped, tag = 'output window, operand 0, single buffered']
    #allocation4 [shape = 's32[1]{0}', space=sflag, size = 0x4, scoped, tag = 'scoped memory for tpu_custom_call.1']
    %8 = vsyncpa [#allocation4], 0
    // Predicated region
    $region2: #{tpu_custom_call.1} parent=1 // pred_check
      _
    $region3: #{tpu_custom_call.1} parent=1 // pred_check_branch
      %10 = sbr.rel (0) target = $region5
    $region4: #{tpu_custom_call.1} parent=1 // pred_region
      _
    $region5: #{tpu_custom_call.1} parent=1 // pred_fallthru
      _
    // Predicated region
    $region6: #{tpu_custom_call.1} parent=1 // pred_check
      _
    $region7: #{tpu_custom_call.1} parent=1 // pred_check_branch
      %12 = sbr.rel (0) target = $region9
    $region8: #{tpu_custom_call.1} parent=1 // pred_region
      _
    $region9: #{tpu_custom_call.1} parent=1 // pred_fallthru
      _
    // Predicated region
    $region10: #{tpu_custom_call.1} parent=1 // pred_check
      _
    $region11: #{tpu_custom_call.1} parent=1 // pred_check_branch
      %14 = sbr.rel (0) target = $region13
    $region12: #{tpu_custom_call.1} parent=1 // pred_region
      _
    $region13: #{tpu_custom_call.1} parent=1 // pred_fallthru
      _
    %p15 = scmp.eq.s32.totalorder 0, 0
    // Predicated region
    $region14: #{tpu_custom_call.1} parent=1 // pred_check
      %p16 = pneg %p15
    $region15: #{tpu_custom_call.1} parent=1 // pred_check_branch
      %18 = sbr.rel (%p16) target = $region17
    $region16: #{tpu_custom_call.1} parent=1 // pred_region
      %vm19 = vcmask 261120
      %20 = vst.msk [vmem:[#allocation2] sm:$0xff] %vm19, 0.0
      %21 = vst.msk [vmem:[#allocation2 + $0x8] sm:$0xff] %vm19, 0.0
      %22 = vst.msk [vmem:[#allocation2 + $0x10] sm:$0xff] %vm19, 0.0
      %23 = vst.msk [vmem:[#allocation2 + $0x18] sm:$0xff] %vm19, 0.0
    $region17: #{tpu_custom_call.1} parent=1 // pred_fallthru
      _
    %v24 = vld [vmem:[#allocation2] sm:$0xff]
    %v25 = vld [vmem:[#allocation2 + $0x8] sm:$0xff]
    %v26 = vld [vmem:[#allocation2 + $0x10] sm:$0xff]
    %v27 = vld [vmem:[#allocation2 + $0x18] sm:$0xff]
    %v28 = vld [vmem:[%s0] sm:$0xff]
    %v29 = vld [vmem:[%s0 + $0x8] sm:$0xff]
    %v30 = vld [vmem:[%s0 + $0x10] sm:$0xff]
    %v31 = vld [vmem:[%s0 + $0x18] sm:$0xff]
    %v32 = vld [vmem:[%s1] sm:$0xff]
    %v33 = vld [vmem:[%s1 + $0x8] sm:$0xff]
    %v34 = vld [vmem:[%s1 + $0x10] sm:$0xff]
    %v35 = vld [vmem:[%s1 + $0x18] sm:$0xff]
    %v36 = vld [vmem:[%s1 + $0x20] sm:$0xff]
    %v37 = vld [vmem:[%s1 + $0x28] sm:$0xff]
    %v38 = vld [vmem:[%s1 + $0x30] sm:$0xff]
    %v39 = vld [vmem:[%s1 + $0x38] sm:$0xff]
    %vm40 = vcmask 523264
    %v42 = vsel %vm40, %v28, 0
    %v45 = vsel %vm40, %v29, 0
    %v48 = vsel %vm40, %v30, 0
    %v51 = vsel %vm40, %v31, 0
    %53 = vmatpush.msra.mxu0 0.0
    %54 = vmatpush.msra.mxu0 0.0
    %55 = vmatpush.msra.mxu0 0.0
    %56 = vmatpush.msra.mxu0 0.0
    %57 = vmatpush.msra.mxu0 0.0
    %58 = vmatpush.msra.mxu0 0.0
    %59 = vmatpush.msra.mxu0 0.0
    %60 = vmatpush.msra.mxu0 0.0
    %61 = vmatpush.msra.mxu0 %v39
    %62 = vmatpush.msra.mxu0 %v38
    %63 = vmatpush.msra.mxu0 %v37
    %64 = vmatpush.msra.mxu0 %v36
    %65 = vmatpush.msra.mxu0 %v35
    %66 = vmatpush.msra.mxu0 %v34
    %67 = vmatpush.msra.mxu0 %v33
    %68 = vmatpush.msra.mxu0 %v32
    %69 = vmatmul.f32.gmra.mxu0 %v42
    %v70 = vpop.f32.mrf.mxu0
    %v71 = vadd.f32 0.0, %v70
    %72 = vmatmul.f32.gmra.mxu0 %v45
    %v73 = vpop.f32.mrf.mxu0
    %v74 = vadd.f32 0.0, %v73
    %75 = vmatmul.f32.gmra.mxu0 %v48
    %v76 = vpop.f32.mrf.mxu0
    %v77 = vadd.f32 0.0, %v76
    %78 = vmatmul.f32.gmra.mxu0 %v51
    %v79 = vpop.f32.mrf.mxu0
    %v80 = vadd.f32 0.0, %v79
    %81 = vdwg.mxu0
    %v82 = vadd.f32 %v24, %v71
    %v83 = vadd.f32 %v25, %v74
    %v84 = vadd.f32 %v26, %v77
    %v85 = vadd.f32 %v27, %v80
    %vm86 = vcmask 261120
    %87 = vst.msk [vmem:[#allocation2] sm:$0xff] %vm86, %v82
    %88 = vst.msk [vmem:[#allocation2 + $0x8] sm:$0xff] %vm86, %v83
    %89 = vst.msk [vmem:[#allocation2 + $0x10] sm:$0xff] %vm86, %v84
    %90 = vst.msk [vmem:[#allocation2 + $0x18] sm:$0xff] %vm86, %v85
    // Predicated region
    $region18: #{tpu_custom_call.1} parent=1 // pred_check
      %p91 = pneg %p15
    $region19: #{tpu_custom_call.1} parent=1 // pred_check_branch
      %93 = sbr.rel (%p91) target = $region21
    $region20: #{tpu_custom_call.1} parent=1 // pred_region
      %v94 = vld [vmem:[#allocation2] sm:$0xff]
      %v95 = vld [vmem:[#allocation2 + $0x8] sm:$0xff]
      %v96 = vld [vmem:[#allocation2 + $0x10] sm:$0xff]
      %v97 = vld [vmem:[#allocation2 + $0x18] sm:$0xff]
      %v98 = vld [vmem:[%s2] sm:$0xff]
      %v99 = vld [vmem:[%s2 + $0x8] sm:$0xff]
      %v100 = vld [vmem:[%s2 + $0x10] sm:$0xff]
      %v101 = vld [vmem:[%s2 + $0x18] sm:$0xff]
      %v102 = vadd.f32 %v94, %v98
      %v103 = vadd.f32 %v95, %v99
      %v104 = vadd.f32 %v96, %v100
      %v105 = vadd.f32 %v97, %v101
      %106 = vst.msk [vmem:[#allocation3] sm:$0xff] %vm86, %v102
      %107 = vst.msk [vmem:[#allocation3 + $0x8] sm:$0xff] %vm86, %v103
      %108 = vst.msk [vmem:[#allocation3 + $0x10] sm:$0xff] %vm86, %v104
      %109 = vst.msk [vmem:[#allocation3 + $0x18] sm:$0xff] %vm86, %v105
    $region21: #{tpu_custom_call.1} parent=1 // pred_fallthru
      _
    // Predicated region
    $region22: #{tpu_custom_call.1} parent=1 // pred_check
      _
    $region23: #{tpu_custom_call.1} parent=1 // pred_check_branch
      %111 = sbr.rel (0) target = $region25
    $region24: #{tpu_custom_call.1} parent=1 // pred_region
      %113 = vsyncadd [#allocation4], 0
      %s114 = sshll.u32 [#allocation3], 4
      %s115 = int_to_ptr.vmem [resolvable:$true] %s114
      %s116 = sshll.u32 %s3, 4
      %s117 = int_to_ptr.hbm [resolvable:$true] %s116
      %122 = dma.vmem_to_hbm [thread:$0]  %s115, 512, %s117, [#allocation4], 128, 128, 8
    $region25: #{tpu_custom_call.1} parent=1 // pred_fallthru
      _
    // Predicated region
    $region26: #{tpu_custom_call.1} parent=1 // pred_check
      _
    $region27: #{tpu_custom_call.1} parent=1 // pred_check_branch
      %124 = sbr.rel (0) target = $region29
    $region28: #{tpu_custom_call.1} parent=1 // pred_region
      %126 = dma.done [#allocation4], 512
    $region29: #{tpu_custom_call.1} parent=1 // pred_fallthru
      _
    %127 = vsyncpa [#allocation4], 1

</llo_original>
